<compile_context>
chip_gen: v5e
topology: v5e:2x2
jax: 0.10.0
libtpu: 0.0.40
codegen_flags: <defaults>
</compile_context>

<pallas_src>
import jax
import jax.numpy as jnp
import numpy as np
from jax.experimental import pallas as pl
from jax.experimental.pallas import tpu as pltpu

# ----------------------------- config (synthetic) ---------------------------
FG_CLASS = 3                     # cfg.MODEL.ROI_BOX_HEAD.NUM_CLASSES - 1
NUM_CLASSES = FG_CLASS + 1
N_PER_CLASS = 8                  # instances per fg class (static shapes)
N_INSTANCES = FG_CLASS * N_PER_CLASS
MASK_H = MASK_W = 16             # small spatial (PyTorch mask head would be 28x28)
L_SPATIAL = MASK_H * MASK_W      # 256 -> multiple of 128, lane-dense slabs
ROI_C = 4                        # channels of features_RoI (unused on CAM path)


# ------------------------------ Pallas kernel --------------------------------
def cam_refine_kernel(x_ref, gamma_ref, o_ref):
    """One fg-class group per grid step: CAM channel attention over the group's
    own-class mask slab, refined in place.

    x_ref    : VMEM (n, L)   slab (rows of group g, class channel g+1) of the
                             aliased sorted_feature_mask -- identical data to
                             select_feature_mask[g] in the PyTorch code.
    gamma_ref: SMEM (1,)     CAM gamma parameter.
    o_ref    : VMEM (n, L)   same slab of the aliased output.
    """
    x = x_ref[...].astype(jnp.float32)                        # (n, L)

    # energy = x @ x^T.  Contracting dims (1, 1) map to the MXU's transposed-RHS
    # load (no XLU/VMEM transpose is materialised; same pattern as the reference
    # flash-attention kernel).  HIGHEST precision keeps full f32 accuracy.
    energy = jax.lax.dot_general(
        x, x, (((1,), (1,)), ((), ())),
        preferred_element_type=jnp.float32,
        precision=jax.lax.Precision.HIGHEST)                  # (n, n)

    # softmax(rowmax(E) - E) == softmax(-E) per row (shift invariance), so the
    # explicit rowmax-subtract of the PyTorch code folds into the usual
    # numerically-stable softmax of -E.
    neg = -energy
    m = jnp.max(neg, axis=-1, keepdims=True)
    p = jnp.exp(neg - m)
    denom = jnp.sum(p, axis=-1, keepdims=True)
    # gamma folded into the (n, 1) softmax scale (perf feedback #3).  An exact
    # divide keeps attention rows summing to 1; pl.reciprocal(approx=True) is the
    # EUP-slot option once the group size is large enough to matter.
    attn_scaled = p * (gamma_ref[0] / denom)                   # (n, n)

    out = jnp.dot(attn_scaled, x,
                  preferred_element_type=jnp.float32,
                  precision=jax.lax.Precision.HIGHEST)         # (n, L)
    o_ref[...] = (out + x).astype(o_ref.dtype)


def cam_relation_refine_pallas(fm_flat, gamma):
    """fm_flat: (N, num_cls*L) f32 flattened sorted_feature_mask; gamma: (1,) f32.

    Returns fm_flat with the refined own-class slab of every class group
    overwritten; every other channel passes through untouched via aliasing
    (unvisited output blocks keep the donated input's contents).
    """
    n_rows, cl = fm_flat.shape
    assert n_rows == FG_CLASS * N_PER_CLASS and cl == NUM_CLASSES * L_SPATIAL
    # (8, 128) alignment of the slab loads/stores (perf feedback #9): keeps the
    # writes as unmasked vst / lane-dense DMAs if the config changes.
    assert N_PER_CLASS % 8 == 0, "N_PER_CLASS must stay a multiple of 8 sublanes"
    assert L_SPATIAL % 128 == 0, "mask H*W must stay a multiple of 128 lanes (pad if not)"

    slab = (N_PER_CLASS, L_SPATIAL)
    return pl.pallas_call(
        cam_refine_kernel,
        out_shape=jax.ShapeDtypeStruct((n_rows, cl), fm_flat.dtype),
        grid_spec=pltpu.PrefetchScalarGridSpec(
            num_scalar_prefetch=0,
            grid=(FG_CLASS,),
            in_specs=[
                # The CAM input of group g is exactly the slab it refines:
                # rows [g*n, (g+1)*n), class channel g+1.
                pl.BlockSpec(slab, lambda g: (g, g + 1)),
                pl.BlockSpec(memory_space=pltpu.MemorySpace.SMEM),
            ],
            out_specs=pl.BlockSpec(slab, lambda g: (g, g + 1)),
        ),
        # In-place refine: output aliases the sorted_feature_mask buffer and the
        # grid only visits the refined slabs -> no pass-through copy, no
        # wrapper-level XLA scatter, ~8x less HBM traffic than copying the full
        # (N, num_cls*L) block through VMEM.
        input_output_aliases={0: 0},
        compiler_params=pltpu.CompilerParams(
            dimension_semantics=("parallel",)),   # disjoint slabs: v7x can split groups
    )(fm_flat, gamma)


# --------------------------- pure-JAX reference -------------------------------
def cam_module_ref(x_g, gamma):
    """CAM_Module.forward for one (n, L) group, exactly the PyTorch formula."""
    energy = jnp.dot(x_g, x_g.T, precision=jax.lax.Precision.HIGHEST)
    e_new = jnp.max(energy, -1, keepdims=True) - energy
    attn = jax.nn.softmax(e_new, axis=-1)
    return gamma * jnp.dot(attn, x_g, precision=jax.lax.Precision.HIGHEST) + x_g


# --------------------------- plain-JAX glue ----------------------------------
def prepare_msk_relation(features_roi, feature_mask, labels, objectness, bbox):
    """Per-class gather + sort by objectness (descending), static class sizes.

    TODO(synk): jnp.nonzero(..., size=N_PER_CLASS) assumes exactly N_PER_CLASS
    instances per class (pads with index 0 otherwise); real variable-count
    proposals need ragged handling.
    TODO(synk): at production sizes this gather should move into the Pallas
    kernel via scalar-prefetched sorted row indices + manual DMA gather instead
    of materialising sorted_feature_mask through an XLA gather first.
    """
    sorted_index = []
    for c in range(FG_CLASS):
        idx = jnp.nonzero(labels == c + 1, size=N_PER_CLASS)[0]
        order = jnp.argsort(-objectness[idx])            # descending sort
        sorted_index.append(idx[order])
    sorted_index = jnp.concatenate(sorted_index, 0)              # (G*n,)
    sorted_feature_mask = feature_mask[sorted_index]             # (N, num_cls, H, W)
    sorted_rois = features_roi[sorted_index]
    sorted_bboxes = bbox[sorted_index]                           # (N, 4)
    # Class labels of the rows of the grouped/sorted stack (class-major order).
    sorted_labels = jnp.repeat(jnp.arange(1, FG_CLASS + 1), N_PER_CLASS)
    # TODO(synk): BoxList / cat_boxlist bookkeeping has no array equivalent; the
    # sorted bbox tensor stands in for sorted_proposals.
    return sorted_index, sorted_feature_mask, sorted_rois, sorted_bboxes, sorted_labels


def mask_relation_refine_net_forward(params, x, use_pallas=True):
    """MaskRelationRefineNet.forward for cfg.MODEL.RELATION_MASK.TYPE == 'CAM'.

    x = (features_RoI, feature_mask, proposals, targets); proposals given as a
    dict of arrays {'labels', 'objectness', 'bbox'}.

    Note (documented divergence): the refined mask of sorted row i is written
    into class channel (i // N_PER_CLASS) + 1 (its own sorted label).  The
    literal PyTorch code indexes with original-order gt_labels, which only
    coincides when the proposals already arrive class-sorted.
    """
    features_roi, feature_mask, proposals, targets = x
    labels = proposals["labels"]
    objectness = proposals["objectness"]
    bbox = proposals["bbox"]

    (_, sorted_feature_mask, _sorted_rois, sorted_bboxes, sorted_labels) = (
        prepare_msk_relation(features_roi, feature_mask, labels, objectness, bbox))

    N, num_cls, H, W = sorted_feature_mask.shape
    L = H * W

    if use_pallas:
        fm_flat = sorted_feature_mask.reshape(N, num_cls * L)    # lane-dense layout
        out_flat = cam_relation_refine_pallas(fm_flat, params["cam_gamma"])
        sorted_feature_mask = out_flat.reshape(N, num_cls, H, W)
    else:
        index = jnp.arange(N)
        x_flat = sorted_feature_mask[index, sorted_labels].reshape(
            FG_CLASS, N_PER_CLASS, L)
        refined = jax.vmap(cam_module_ref, in_axes=(0, None))(
            x_flat, params["cam_gamma"][0])
        refined = refined.reshape(N, H, W)
        sorted_feature_mask = sorted_feature_mask.at[index, sorted_labels].set(refined)

    # TODO(synk): CIAM branch needs appearance_feature_extractor / predictor /
    # deconv+classifier convs which are external modules; not implemented here.
    return sorted_feature_mask, sorted_bboxes, targets, None


# ------------------------------- main ----------------------------------------
if __name__ == "__main__":
    key = jax.random.PRNGKey(0)
    k1, k2, k3, k4, k5 = jax.random.split(key, 5)

    features_roi = jax.random.normal(k1, (N_INSTANCES, ROI_C, MASK_H, MASK_W),
                                     dtype=jnp.float32)
    feature_mask = jax.random.normal(k2, (N_INSTANCES, NUM_CLASSES, MASK_H, MASK_W),
                                     dtype=jnp.float32)
    labels = jax.random.permutation(
        k3, jnp.repeat(jnp.arange(1, FG_CLASS + 1), N_PER_CLASS))
    objectness = jax.random.uniform(k4, (N_INSTANCES,), dtype=jnp.float32)
    bbox = jax.random.uniform(k5, (N_INSTANCES, 4), dtype=jnp.float32) * 32.0

    params = {
        # nn.Parameter(torch.zeros(1)) in the module; nonzero here so the
        # attention path is actually exercised.
        "cam_gamma": jnp.array([0.5], dtype=jnp.float32),
        # Shapes from __init__ (unused on the CAM path):
        "classifier_w": jnp.zeros((3, 1, 1, 1), jnp.float32),   # Conv2d(1, 3, 1)
        "classifier_b": jnp.zeros((3,), jnp.float32),
        "deconv_w": jnp.zeros((1, 1, 2, 2), jnp.float32),       # ConvTranspose2d
        "deconv_b": jnp.zeros((1,), jnp.float32),
    }

    proposals = {"labels": labels, "objectness": objectness, "bbox": bbox}
    inputs = (features_roi, feature_mask, proposals, None)

    out_mask, out_boxes, _, _ = mask_relation_refine_net_forward(
        params, inputs, use_pallas=True)
    out_mask = jax.block_until_ready(out_mask)

    ref_mask, _, _, _ = mask_relation_refine_net_forward(
        params, inputs, use_pallas=False)
    ref_mask = jax.block_until_ready(ref_mask)

    # Both paths use full-f32 (HIGHEST) matmuls and an exact softmax divide, so
    # residual differences are a few ULP of exp/accumulation order only.
    np.testing.assert_allclose(np.asarray(out_mask), np.asarray(ref_mask),
                               rtol=2e-3, atol=2e-3)
    print("KERNEL_OK")
</pallas_src>

<mosaic_0001>
module attributes {stable_mosaic.version = 11 : i64} {
  func.func @cam_refine_kernel(%arg0: i32, %arg1: memref<8x256xf32, #tpu.memory_space<vmem>>, %arg2: memref<1xf32, #tpu.memory_space<smem>>, %arg3: memref<8x256xf32, #tpu.memory_space<vmem>>) attributes {dimension_semantics = [#tpu.dimension_semantics<parallel>], iteration_bounds = array<i64: 3>, scalar_prefetch = 0 : i64, scratch_operands = 0 : i64, tpu.core_type = #tpu.core_type<tc>, window_params = [{transform_indices = @transform_0, window_bounds = array<i64: 8, 256>}, {transform_indices = @transform_1, window_bounds = array<i64: 1>}, {transform_indices = @transform_2, window_bounds = array<i64: 8, 256>}]} {
    %c0 = arith.constant 0 : index
    %c0_0 = arith.constant 0 : index
    %0 = vector.load %arg1[%c0, %c0_0] : memref<8x256xf32, #tpu.memory_space<vmem>>, vector<8x256xf32>
    %cst = arith.constant dense<0.000000e+00> : vector<8x8xf32>
    %1 = tpu.matmul %0, %0, %cst {dimension_numbers = #tpu.dot_dimension_numbers<[1], [1], [0], [0], [0, 0, 1, 0], [], []>, precision = #tpu.contract_precision<fp32>} : vector<8x256xf32>, vector<8x256xf32>, vector<8x8xf32> -> vector<8x8xf32>
    %cst_1 = arith.constant 0.000000e+00 : f32
    %2 = vector.broadcast %cst_1 : f32 to vector<8x8xf32>
    %3 = arith.subf %2, %1 : vector<8x8xf32>
    %cst_2 = arith.constant dense<0xFF800000> : vector<8xf32>
    %4 = vector.multi_reduction <maximumf>, %3, %cst_2 [1] : vector<8x8xf32> to vector<8xf32>
    %5 = vector.shape_cast %4 : vector<8xf32> to vector<8x1xf32>
    %6 = vector.broadcast %5 : vector<8x1xf32> to vector<8x8xf32>
    %7 = arith.subf %3, %6 : vector<8x8xf32>
    %8 = math.exp %7 : vector<8x8xf32>
    %cst_3 = arith.constant dense<0.000000e+00> : vector<8xf32>
    %9 = vector.multi_reduction <add>, %8, %cst_3 [1] : vector<8x8xf32> to vector<8xf32>
    %10 = vector.shape_cast %9 : vector<8xf32> to vector<8x1xf32>
    %c0_4 = arith.constant 0 : index
    %11 = memref.load %arg2[%c0_4] : memref<1xf32, #tpu.memory_space<smem>>
    %12 = vector.broadcast %11 : f32 to vector<8x1xf32>
    %13 = arith.divf %12, %10 : vector<8x1xf32>
    %14 = vector.broadcast %13 : vector<8x1xf32> to vector<8x8xf32>
    %15 = arith.mulf %8, %14 : vector<8x8xf32>
    %cst_5 = arith.constant dense<0.000000e+00> : vector<8x256xf32>
    %16 = tpu.matmul %15, %0, %cst_5 {dimension_numbers = #tpu.dot_dimension_numbers<[1], [0], [0], [1], [0, 0, 1, 1], [], []>, precision = #tpu.contract_precision<fp32>} : vector<8x8xf32>, vector<8x256xf32>, vector<8x256xf32> -> vector<8x256xf32>
    %17 = arith.addf %16, %0 : vector<8x256xf32>
    %c0_6 = arith.constant 0 : index
    %c0_7 = arith.constant 0 : index
    %18 = vector.load %arg3[%c0_6, %c0_7] : memref<8x256xf32, #tpu.memory_space<vmem>>, vector<8x256xf32>
    tpu.vector_store %arg3[%c0_6, %c0_7], %17 {strides = array<i32>} : memref<8x256xf32, #tpu.memory_space<vmem>>, vector<8x256xf32>,
    return
  }
  func.func @transform_0(%arg0: i32) -> (i32, i32) {
    %c1_i32 = arith.constant 1 : i32
    %0 = arith.addi %arg0, %c1_i32 : i32
    %c0_i32 = arith.constant 0 : i32
    return %arg0, %0 : i32, i32
  }
  func.func @transform_1(%arg0: i32) -> i32 {
    %c0_i32 = arith.constant 0 : i32
    %c0_i32_0 = arith.constant 0 : i32
    return %c0_i32 : i32
  }
  func.func @transform_2(%arg0: i32) -> (i32, i32) {
    %c1_i32 = arith.constant 1 : i32
    %0 = arith.addi %arg0, %c1_i32 : i32
    %c0_i32 = arith.constant 0 : i32
    return %arg0, %0 : i32, i32
  }
}

</mosaic_0001>

<llo_original>
// kernel: tpu_custom_call.1
$region0: #{tpu_custom_call.1}
  #allocation0 [shape = 'u32[]', space=smem, size = 0x4, offset = 0x4, fixed_abs, tag = 'smem constant byte address 0x4 - core index']
  #allocation1 [shape = 'u32[72,128]{1,0:T(1,128)}', space=vmem, size = 0x9000, scoped, tag = 'internal scratch']
  #allocation2 [shape = 'f32[1]{0:T(128)S(6)}', space=smem, size = 0x200, scoped, tag = 'scoped memory for tpu_custom_call.1']
  %s0 = inlined_call_operand.hbm [shape: f32[24,1024], index: 0, kind: input, shape index: {}, may-alias: {0,2}]
  %s1 = inlined_call_operand.<no memory space> [shape: f32[1], index: 1, kind: input, shape index: {}]
  %s2 = inlined_call_operand.hbm [shape: f32[24,1024], index: 2, kind: output, shape index: {}, may-alias: {0,2}]
  %s3 = sld [smem:[#allocation0]]
  $region45: #{tpu_custom_call.1} parent=0
    _
  %s5 = ssub.s32 1, %s3
  %s6 = scalar_select 0, %s5, %s3
  %7 = sst [smem:[#allocation2]] %s1
  $region1: #{tpu_custom_call.1} parent=0
    #allocation3 [shape = 'u8[16384]{0}', space=vmem, size = 0x4000, scoped, tag = 'input window, operand 0']
    #allocation4 [shape = 's32[2]{0}', space=sflag, size = 0x8, scoped, tag = 'scoped memory for tpu_custom_call.1']
    #allocation5 [shape = 's32[2]{0}', space=sflag, size = 0x8, scoped, tag = 'scoped memory for tpu_custom_call.1']
    #allocation6 [shape = 'u8[16384]{0}', space=vmem, size = 0x4000, scoped, tag = 'output window, operand 0']
    %8 = vsyncpa [#allocation4], 0
    %s9 = scalar_lea.sflag [#allocation4], 1
    %10 = vsyncpa %s9, 0
    %11 = vsyncpa [#allocation5], 0
    %s12 = scalar_lea.sflag [#allocation5], 1
    %13 = vsyncpa %s12, 0
    loop: start=0, step=1, limit=5
    $region2: #{tpu_custom_call.1} parent=1 // loop_pre_header
      _
    $region3: #{tpu_custom_call.1} parent=1 // loop_header
      %s15 = sphi 0, %s19
      %p16 = scmp.ge.s32.totalorder %s15, 5
      %s29 = sphi 0, %s31
      %s32 = sphi 0, %s29
      %s33 = sphi 0, %s32
      %s49 = sphi 0, %s33
      %s53 = sphi 0, %s53
      %s55 = sphi 0, %s53
      %s56 = sphi 0, %s55
      %s70 = sphi 0, %s56
      %s80 = sphi 0, %s82
      %s83 = sphi 0, %s80
      %s84 = sphi 0, %s83
      %s100 = sphi 0, %s84
    $region4: #{tpu_custom_call.1} parent=1 // loop_header_branch
      %18 = sbr.rel (%p16) target = $region8
    $region5: #{tpu_custom_call.1} parent=1 // loop_body
      %s20 = ssub.s32 %s15, 1
      %s21 = ssub.s32 %s15, 2
      %s22 = sadd.s32 %s15, 1
      %s23 = sadd.s32 %s15, 1
      %s24 = sadd.s32 %s22, 1
      %s25 = ssub.s32 %s15, %s22
      %s26 = ssub.s32 %s23, %s24
      %s27 = sor.u32 %s25, %s26
      %p28 = scmp.eq.s32.totalorder %s27, 0
      %s30 = sadd.s32 %s29, 1
      %s31 = scalar_select %p28, %s29, %s30
      %p34 = pneg %p28
      %p35 = scmp.eq.s32.totalorder %s15, 2
      %p36 = por %p34, %p35
      %p37 = scmp.ne.s32.totalorder %s29, %s32
      %p38 = scmp.eq.s32.totalorder %s15, 0
      %p39 = por %p37, %p38
      %p40 = scmp.ne.s32.totalorder %s29, %s32
      %p41 = scmp.eq.s32.totalorder %s20, 2
      %p42 = por %p40, %p41
      %p43 = scmp.ne.s32.totalorder %s32, %s33
      %p44 = scmp.eq.s32.totalorder %s20, 0
      %p45 = por %p43, %p44
      %p46 = scmp.ne.s32.totalorder %s32, %s33
      %p47 = scmp.eq.s32.totalorder %s21, 2
      %p48 = por %p46, %p47
      %p50 = scmp.ne.s32.totalorder %s33, %s49
      %p51 = scmp.eq.s32.totalorder %s21, 0
      %p52 = por %p50, %p51
      %s54 = sadd.s32 %s53, 1
      %p57 = scmp.eq.s32.totalorder %s15, 2
      %p58 = scmp.ne.s32.totalorder %s53, %s55
      %p59 = scmp.eq.s32.totalorder %s15, 0
      %p60 = por %p58, %p59
      %p61 = scmp.ne.s32.totalorder %s53, %s55
      %p62 = scmp.eq.s32.totalorder %s20, 2
      %p63 = por %p61, %p62
      %p64 = scmp.ne.s32.totalorder %s55, %s56
      %p65 = scmp.eq.s32.totalorder %s20, 0
      %p66 = por %p64, %p65
      %p67 = scmp.ne.s32.totalorder %s55, %s56
      %p68 = scmp.eq.s32.totalorder %s21, 2
      %p69 = por %p67, %p68
      %p71 = scmp.ne.s32.totalorder %s56, %s70
      %p72 = scmp.eq.s32.totalorder %s21, 0
      %p73 = por %p71, %p72
      %s74 = sadd.s32 %s15, 1
      %s75 = sadd.s32 %s22, 1
      %s76 = ssub.s32 %s15, %s22
      %s77 = ssub.s32 %s74, %s75
      %s78 = sor.u32 %s76, %s77
      %p79 = scmp.eq.s32.totalorder %s78, 0
      %s81 = sadd.s32 %s80, 1
      %s82 = scalar_select %p79, %s80, %s81
      %p85 = pneg %p79
      %p86 = scmp.eq.s32.totalorder %s15, 2
      %p87 = por %p85, %p86
      %p88 = scmp.ne.s32.totalorder %s80, %s83
      %p89 = scmp.eq.s32.totalorder %s15, 0
      %p90 = por %p88, %p89
      %p91 = scmp.ne.s32.totalorder %s80, %s83
      %p92 = scmp.eq.s32.totalorder %s20, 2
      %p93 = por %p91, %p92
      %p94 = scmp.ne.s32.totalorder %s83, %s84
      %p95 = scmp.eq.s32.totalorder %s20, 0
      %p96 = por %p94, %p95
      %p97 = scmp.ne.s32.totalorder %s83, %s84
      %p98 = scmp.eq.s32.totalorder %s21, 2
      %p99 = por %p97, %p98
      %p101 = scmp.ne.s32.totalorder %s84, %s100
      %p102 = scmp.eq.s32.totalorder %s21, 0
      %p103 = por %p101, %p102
      %p104 = scmp.le.s32.totalorder 1, %s15
      %p105 = scmp.lt.s32.totalorder %s15, 4
      %p106 = pnand %p104, %p105
      %p107 = pneg %p106
      // Predicated region
      $region9: #{tpu_custom_call.1} parent=5 // pred_check
        _
      $region10: #{tpu_custom_call.1} parent=5 // pred_check_branch
        %109 = sbr.rel (%p106) target = $region12
      $region11: #{tpu_custom_call.1} parent=5 // pred_region
        %s110 = ssub.s32 %s15, 1
        // Predicated region
        $region13: #{tpu_custom_call.1} parent=11 // pred_check
          %p111 = pneg %p66
        $region14: #{tpu_custom_call.1} parent=11 // pred_check_branch
          %113 = sbr.rel (%p111) target = $region16
        $region15: #{tpu_custom_call.1} parent=11 // pred_region
          _
        $region16: #{tpu_custom_call.1} parent=11 // pred_fallthru
          _
      $region12: #{tpu_custom_call.1} parent=5 // pred_fallthru
        _
      %p114 = scmp.lt.s32.totalorder %s15, 3
      // Predicated region
      $region17: #{tpu_custom_call.1} parent=5 // pred_check
        %p115 = pneg %p114
      $region18: #{tpu_custom_call.1} parent=5 // pred_check_branch
        %117 = sbr.rel (%p115) target = $region20
      $region19: #{tpu_custom_call.1} parent=5 // pred_region
        // Predicated region
        $region21: #{tpu_custom_call.1} parent=19 // pred_check
          %p118 = pneg %p39
        $region22: #{tpu_custom_call.1} parent=19 // pred_check_branch
          %120 = sbr.rel (%p118) target = $region24
        $region23: #{tpu_custom_call.1} parent=19 // pred_region
          %s121 = sand.u32 %s29, 1
          %s122 = scalar_lea.sflag [#allocation4], %s121
          %s123 = sand.u32 %s29, 1
          %s124 = smul.addr %s123, 16
          %s125 = scalar_lea.vmem [#allocation3], %s124
          %s126 = sadd.s32 %s15, 1
          %s127 = smul.u32 2, %s126
          %129 = vsyncadd %s122, 0
          %s130 = smul.addr %s15, 8
          %s131 = sadd.s32 %s127, %s130
          %s132 = smul.addr %s131, 8
          %s133 = scalar_lea.hbm %s0, %s132
          %s135 = sshll.u32 %s133, 4
          %s136 = int_to_ptr.hbm [resolvable:$true] %s135
          %s137 = sshll.u32 %s125, 4
          %s138 = int_to_ptr.vmem [resolvable:$true] %s137
          %140 = dma.hbm_to_vmem [thread:$0]  %s136, 256, %s138, %s122
        $region24: #{tpu_custom_call.1} parent=19 // pred_fallthru
          _
      $region20: #{tpu_custom_call.1} parent=5 // pred_fallthru
        _
      %p141 = scmp.le.s32.totalorder 1, %s15
      %p142 = scmp.lt.s32.totalorder %s15, 4
      %p143 = pnand %p141, %p142
      %p144 = pneg %p143
      // Predicated region
      $region25: #{tpu_custom_call.1} parent=5 // pred_check
        _
      $region26: #{tpu_custom_call.1} parent=5 // pred_check_branch
        %146 = sbr.rel (%p143) target = $region28
      $region27: #{tpu_custom_call.1} parent=5 // pred_region
        %s147 = ssub.s32 %s15, 1
        %s148 = sand.u32 %s32, 1
        %s149 = scalar_lea.sflag [#allocation4], %s148
        %s150 = sand.u32 %s32, 1
        %s151 = smul.addr %s150, 16
        %s152 = scalar_lea.vmem [#allocation3], %s151
        // Predicated region
        $region29: #{tpu_custom_call.1} parent=27 // pred_check
          %p153 = pneg %p45
        $region30: #{tpu_custom_call.1} parent=27 // pred_check_branch
          %155 = sbr.rel (%p153) target = $region32
        $region31: #{tpu_custom_call.1} parent=27 // pred_region
          %157 = dma.done %s149, 256
        $region32: #{tpu_custom_call.1} parent=27 // pred_fallthru
          _
        %s158 = sand.u32 %s32, 1
        %s159 = scalar_lea.sflag [#allocation4], %s158
        %s160 = sand.u32 %s32, 1
        %s161 = smul.addr %s160, 16
        %s162 = scalar_lea.vmem [#allocation3], %s161
        %p163 = pneg %p45
        %p164 = pneg %p42
        %p165 = pneg %p66
        %p166 = pneg %p63
        %p167 = pneg %p96
        %p168 = pneg %p93
        %s169 = sand.u32 %s83, 1
        %s170 = scalar_lea.sflag [#allocation5], %s169
        %s171 = sand.u32 %s83, 1
        %s172 = smul.addr %s171, 16
        %s173 = scalar_lea.vmem [#allocation6], %s172
        %s174 = sadd.s32 %s20, 1
        %s175 = smul.u32 2, %s174
        %s176 = sadd.s32 %s20, 1
        %s177 = smul.u32 2, %s176
        %v178 = vld [vmem:[%s152] sm:$0xff]
        %v179 = vld [vmem:[%s152 + $0x8] sm:$0xff]
        %180 = vmatpush.xpose.msra.mxu0 0.0
        %181 = vmatpush.xpose.msra.mxu0 0.0
        %182 = vmatpush.xpose.msra.mxu0 0.0
        %183 = vmatpush.xpose.msra.mxu0 0.0
        %184 = vmatpush.xpose.msra.mxu0 0.0
        %185 = vmatpush.xpose.msra.mxu0 0.0
        %186 = vmatpush.xpose.msra.mxu0 0.0
        %187 = vmatpush.xpose.msra.mxu0 0.0
        %188 = vmatpush.xpose.msra.mxu0 0.0
        %189 = vmatpush.xpose.msra.mxu0 0.0
        %190 = vmatpush.xpose.msra.mxu0 0.0
        %191 = vmatpush.xpose.msra.mxu0 0.0
        %192 = vmatpush.xpose.msra.mxu0 0.0
        %193 = vmatpush.xpose.msra.mxu0 0.0
        %194 = vmatpush.xpose.msra.mxu0 0.0
        %v195 = vand.u32 %v178, 4294901760
        %196 = vmatpush.xpose.msra.mxu0 %v195
        %v197 = vand.u32 %v178, 4294901760
        %v198 = vsub.f32 %v178, %v197
        %v199 = vand.u32 %v198, 4294901760
        %v200 = vsub.f32 %v198, %v199
        %v201 = vand.u32 %v200, 4294901760
        %202 = vmatmul.f32.gmra.mxu0 %v201
        %v203 = vpop.f32.mrf.mxu0
        %v204 = vadd.f32 0.0, %v203
        %205 = vdwg.mxu0
        %206 = vmatpush.xpose.msra.mxu0 0.0
        %207 = vmatpush.xpose.msra.mxu0 0.0
        %208 = vmatpush.xpose.msra.mxu0 0.0
        %209 = vmatpush.xpose.msra.mxu0 0.0
        %210 = vmatpush.xpose.msra.mxu0 0.0
        %211 = vmatpush.xpose.msra.mxu0 0.0
        %212 = vmatpush.xpose.msra.mxu0 0.0
        %213 = vmatpush.xpose.msra.mxu0 0.0
        %214 = vmatpush.xpose.msra.mxu0 0.0
        %215 = vmatpush.xpose.msra.mxu0 0.0
        %216 = vmatpush.xpose.msra.mxu0 0.0
        %217 = vmatpush.xpose.msra.mxu0 0.0
        %218 = vmatpush.xpose.msra.mxu0 0.0
        %219 = vmatpush.xpose.msra.mxu0 0.0
        %220 = vmatpush.xpose.msra.mxu0 0.0
        %v221 = vand.u32 %v178, 4294901760
        %v222 = vsub.f32 %v178, %v221
        %v223 = vand.u32 %v222, 4294901760
        %v224 = vsub.f32 %v222, %v223
        %v225 = vand.u32 %v224, 4294901760
        %226 = vmatpush.xpose.msra.mxu0 %v225
        %v227 = vand.u32 %v178, 4294901760
        %228 = vmatmul.f32.gmra.mxu0 %v227
        %v229 = vpop.f32.mrf.mxu0
        %v230 = vadd.f32 %v204, %v229
        %231 = vdwg.mxu0
        %232 = vmatpush.xpose.msra.mxu0 0.0
        %233 = vmatpush.xpose.msra.mxu0 0.0
        %234 = vmatpush.xpose.msra.mxu0 0.0
        %235 = vmatpush.xpose.msra.mxu0 0.0
        %236 = vmatpush.xpose.msra.mxu0 0.0
        %237 = vmatpush.xpose.msra.mxu0 0.0
        %238 = vmatpush.xpose.msra.mxu0 0.0
        %239 = vmatpush.xpose.msra.mxu0 0.0
        %240 = vmatpush.xpose.msra.mxu0 0.0
        %241 = vmatpush.xpose.msra.mxu0 0.0
        %242 = vmatpush.xpose.msra.mxu0 0.0
        %243 = vmatpush.xpose.msra.mxu0 0.0
        %244 = vmatpush.xpose.msra.mxu0 0.0
        %245 = vmatpush.xpose.msra.mxu0 0.0
        %246 = vmatpush.xpose.msra.mxu0 0.0
        %v247 = vand.u32 %v178, 4294901760
        %v248 = vsub.f32 %v178, %v247
        %249 = vmatpush.xpose.msra.mxu0 %v248
        %v250 = vand.u32 %v178, 4294901760
        %v251 = vsub.f32 %v178, %v250
        %252 = vmatmul.f32.gmra.mxu0 %v251
        %v253 = vpop.f32.mrf.mxu0
        %v254 = vadd.f32 %v230, %v253
        %255 = vdwg.mxu0
        %256 = vmatpush.xpose.msra.mxu0 0.0
        %257 = vmatpush.xpose.msra.mxu0 0.0
        %258 = vmatpush.xpose.msra.mxu0 0.0
        %259 = vmatpush.xpose.msra.mxu0 0.0
        %260 = vmatpush.xpose.msra.mxu0 0.0
        %261 = vmatpush.xpose.msra.mxu0 0.0
        %262 = vmatpush.xpose.msra.mxu0 0.0
        %263 = vmatpush.xpose.msra.mxu0 0.0
        %264 = vmatpush.xpose.msra.mxu0 0.0
        %265 = vmatpush.xpose.msra.mxu0 0.0
        %266 = vmatpush.xpose.msra.mxu0 0.0
        %267 = vmatpush.xpose.msra.mxu0 0.0
        %268 = vmatpush.xpose.msra.mxu0 0.0
        %269 = vmatpush.xpose.msra.mxu0 0.0
        %270 = vmatpush.xpose.msra.mxu0 0.0
        %v271 = vand.u32 %v178, 4294901760
        %272 = vmatpush.xpose.msra.mxu0 %v271
        %v273 = vand.u32 %v178, 4294901760
        %v274 = vsub.f32 %v178, %v273
        %v275 = vand.u32 %v274, 4294901760
        %276 = vmatmul.f32.gmra.mxu0 %v275
        %v277 = vpop.f32.mrf.mxu0
        %v278 = vadd.f32 %v254, %v277
        %279 = vdwg.mxu0
        %280 = vmatpush.xpose.msra.mxu0 0.0
        %281 = vmatpush.xpose.msra.mxu0 0.0
        %282 = vmatpush.xpose.msra.mxu0 0.0
        %283 = vmatpush.xpose.msra.mxu0 0.0
        %284 = vmatpush.xpose.msra.mxu0 0.0
        %285 = vmatpush.xpose.msra.mxu0 0.0
        %286 = vmatpush.xpose.msra.mxu0 0.0
        %287 = vmatpush.xpose.msra.mxu0 0.0
        %288 = vmatpush.xpose.msra.mxu0 0.0
        %289 = vmatpush.xpose.msra.mxu0 0.0
        %290 = vmatpush.xpose.msra.mxu0 0.0
        %291 = vmatpush.xpose.msra.mxu0 0.0
        %292 = vmatpush.xpose.msra.mxu0 0.0
        %293 = vmatpush.xpose.msra.mxu0 0.0
        %294 = vmatpush.xpose.msra.mxu0 0.0
        %v295 = vand.u32 %v178, 4294901760
        %v296 = vsub.f32 %v178, %v295
        %v297 = vand.u32 %v296, 4294901760
        %298 = vmatpush.xpose.msra.mxu0 %v297
        %v299 = vand.u32 %v178, 4294901760
        %300 = vmatmul.f32.gmra.mxu0 %v299
        %v301 = vpop.f32.mrf.mxu0
        %v302 = vadd.f32 %v278, %v301
        %303 = vdwg.mxu0
        %304 = vmatpush.xpose.msra.mxu0 0.0
        %305 = vmatpush.xpose.msra.mxu0 0.0
        %306 = vmatpush.xpose.msra.mxu0 0.0
        %307 = vmatpush.xpose.msra.mxu0 0.0
        %308 = vmatpush.xpose.msra.mxu0 0.0
        %309 = vmatpush.xpose.msra.mxu0 0.0
        %310 = vmatpush.xpose.msra.mxu0 0.0
        %311 = vmatpush.xpose.msra.mxu0 0.0
        %312 = vmatpush.xpose.msra.mxu0 0.0
        %313 = vmatpush.xpose.msra.mxu0 0.0
        %314 = vmatpush.xpose.msra.mxu0 0.0
        %315 = vmatpush.xpose.msra.mxu0 0.0
        %316 = vmatpush.xpose.msra.mxu0 0.0
        %317 = vmatpush.xpose.msra.mxu0 0.0
        %318 = vmatpush.xpose.msra.mxu0 0.0
        %v319 = vand.u32 %v178, 4294901760
        %320 = vmatpush.xpose.msra.mxu0 %v319
        %v321 = vand.u32 %v178, 4294901760
        %322 = vmatmul.f32.gmra.mxu0 %v321
        %v323 = vpop.f32.mrf.mxu0
        %v324 = vadd.f32 %v302, %v323
        %325 = vdwg.mxu0
        %326 = vmatpush.xpose.msra.mxu0 0.0
        %327 = vmatpush.xpose.msra.mxu0 0.0
        %328 = vmatpush.xpose.msra.mxu0 0.0
        %329 = vmatpush.xpose.msra.mxu0 0.0
        %330 = vmatpush.xpose.msra.mxu0 0.0
        %331 = vmatpush.xpose.msra.mxu0 0.0
        %332 = vmatpush.xpose.msra.mxu0 0.0
        %333 = vmatpush.xpose.msra.mxu0 0.0
        %334 = vmatpush.xpose.msra.mxu0 0.0
        %335 = vmatpush.xpose.msra.mxu0 0.0
        %336 = vmatpush.xpose.msra.mxu0 0.0
        %337 = vmatpush.xpose.msra.mxu0 0.0
        %338 = vmatpush.xpose.msra.mxu0 0.0
        %339 = vmatpush.xpose.msra.mxu0 0.0
        %340 = vmatpush.xpose.msra.mxu0 0.0
        %v341 = vand.u32 %v179, 4294901760
        %342 = vmatpush.xpose.msra.mxu0 %v341
        %v343 = vand.u32 %v179, 4294901760
        %v344 = vsub.f32 %v179, %v343
        %v345 = vand.u32 %v344, 4294901760
        %v346 = vsub.f32 %v344, %v345
        %v347 = vand.u32 %v346, 4294901760
        %348 = vmatmul.f32.gmra.mxu0 %v347
        %v349 = vpop.f32.mrf.mxu0
        %v350 = vadd.f32 %v324, %v349
        %351 = vdwg.mxu0
        %352 = vmatpush.xpose.msra.mxu0 0.0
        %353 = vmatpush.xpose.msra.mxu0 0.0
        %354 = vmatpush.xpose.msra.mxu0 0.0
        %355 = vmatpush.xpose.msra.mxu0 0.0
        %356 = vmatpush.xpose.msra.mxu0 0.0
        %357 = vmatpush.xpose.msra.mxu0 0.0
        %358 = vmatpush.xpose.msra.mxu0 0.0
        %359 = vmatpush.xpose.msra.mxu0 0.0
        %360 = vmatpush.xpose.msra.mxu0 0.0
        %361 = vmatpush.xpose.msra.mxu0 0.0
        %362 = vmatpush.xpose.msra.mxu0 0.0
        %363 = vmatpush.xpose.msra.mxu0 0.0
        %364 = vmatpush.xpose.msra.mxu0 0.0
        %365 = vmatpush.xpose.msra.mxu0 0.0
        %366 = vmatpush.xpose.msra.mxu0 0.0
        %v367 = vand.u32 %v179, 4294901760
        %v368 = vsub.f32 %v179, %v367
        %v369 = vand.u32 %v368, 4294901760
        %v370 = vsub.f32 %v368, %v369
        %v371 = vand.u32 %v370, 4294901760
        %372 = vmatpush.xpose.msra.mxu0 %v371
        %v373 = vand.u32 %v179, 4294901760
        %374 = vmatmul.f32.gmra.mxu0 %v373
        %v375 = vpop.f32.mrf.mxu0
        %v376 = vadd.f32 %v350, %v375
        %377 = vdwg.mxu0
        %378 = vmatpush.xpose.msra.mxu0 0.0
        %379 = vmatpush.xpose.msra.mxu0 0.0
        %380 = vmatpush.xpose.msra.mxu0 0.0
        %381 = vmatpush.xpose.msra.mxu0 0.0
        %382 = vmatpush.xpose.msra.mxu0 0.0
        %383 = vmatpush.xpose.msra.mxu0 0.0
        %384 = vmatpush.xpose.msra.mxu0 0.0
        %385 = vmatpush.xpose.msra.mxu0 0.0
        %386 = vmatpush.xpose.msra.mxu0 0.0
        %387 = vmatpush.xpose.msra.mxu0 0.0
        %388 = vmatpush.xpose.msra.mxu0 0.0
        %389 = vmatpush.xpose.msra.mxu0 0.0
        %390 = vmatpush.xpose.msra.mxu0 0.0
        %391 = vmatpush.xpose.msra.mxu0 0.0
        %392 = vmatpush.xpose.msra.mxu0 0.0
        %v393 = vand.u32 %v179, 4294901760
        %v394 = vsub.f32 %v179, %v393
        %395 = vmatpush.xpose.msra.mxu0 %v394
        %v396 = vand.u32 %v179, 4294901760
        %v397 = vsub.f32 %v179, %v396
        %398 = vmatmul.f32.gmra.mxu0 %v397
        %v399 = vpop.f32.mrf.mxu0
        %v400 = vadd.f32 %v376, %v399
        %401 = vdwg.mxu0
        %402 = vmatpush.xpose.msra.mxu0 0.0
        %403 = vmatpush.xpose.msra.mxu0 0.0
        %404 = vmatpush.xpose.msra.mxu0 0.0
        %405 = vmatpush.xpose.msra.mxu0 0.0
        %406 = vmatpush.xpose.msra.mxu0 0.0
        %407 = vmatpush.xpose.msra.mxu0 0.0
        %408 = vmatpush.xpose.msra.mxu0 0.0
        %409 = vmatpush.xpose.msra.mxu0 0.0
        %410 = vmatpush.xpose.msra.mxu0 0.0
        %411 = vmatpush.xpose.msra.mxu0 0.0
        %412 = vmatpush.xpose.msra.mxu0 0.0
        %413 = vmatpush.xpose.msra.mxu0 0.0
        %414 = vmatpush.xpose.msra.mxu0 0.0
        %415 = vmatpush.xpose.msra.mxu0 0.0
        %416 = vmatpush.xpose.msra.mxu0 0.0
        %v417 = vand.u32 %v179, 4294901760
        %418 = vmatpush.xpose.msra.mxu0 %v417
        %v419 = vand.u32 %v179, 4294901760
        %v420 = vsub.f32 %v179, %v419
        %v421 = vand.u32 %v420, 4294901760
        %422 = vmatmul.f32.gmra.mxu0 %v421
        %v423 = vpop.f32.mrf.mxu0
        %v424 = vadd.f32 %v400, %v423
        %425 = vdwg.mxu0
        %426 = vmatpush.xpose.msra.mxu0 0.0
        %427 = vmatpush.xpose.msra.mxu0 0.0
        %428 = vmatpush.xpose.msra.mxu0 0.0
        %429 = vmatpush.xpose.msra.mxu0 0.0
        %430 = vmatpush.xpose.msra.mxu0 0.0
        %431 = vmatpush.xpose.msra.mxu0 0.0
        %432 = vmatpush.xpose.msra.mxu0 0.0
        %433 = vmatpush.xpose.msra.mxu0 0.0
        %434 = vmatpush.xpose.msra.mxu0 0.0
        %435 = vmatpush.xpose.msra.mxu0 0.0
        %436 = vmatpush.xpose.msra.mxu0 0.0
        %437 = vmatpush.xpose.msra.mxu0 0.0
        %438 = vmatpush.xpose.msra.mxu0 0.0
        %439 = vmatpush.xpose.msra.mxu0 0.0
        %440 = vmatpush.xpose.msra.mxu0 0.0
        %v441 = vand.u32 %v179, 4294901760
        %v442 = vsub.f32 %v179, %v441
        %v443 = vand.u32 %v442, 4294901760
        %444 = vmatpush.xpose.msra.mxu0 %v443
        %v445 = vand.u32 %v179, 4294901760
        %446 = vmatmul.f32.gmra.mxu0 %v445
        %v447 = vpop.f32.mrf.mxu0
        %v448 = vadd.f32 %v424, %v447
        %449 = vdwg.mxu0
        %450 = vmatpush.xpose.msra.mxu0 0.0
        %451 = vmatpush.xpose.msra.mxu0 0.0
        %452 = vmatpush.xpose.msra.mxu0 0.0
        %453 = vmatpush.xpose.msra.mxu0 0.0
        %454 = vmatpush.xpose.msra.mxu0 0.0
        %455 = vmatpush.xpose.msra.mxu0 0.0
        %456 = vmatpush.xpose.msra.mxu0 0.0
        %457 = vmatpush.xpose.msra.mxu0 0.0
        %458 = vmatpush.xpose.msra.mxu0 0.0
        %459 = vmatpush.xpose.msra.mxu0 0.0
        %460 = vmatpush.xpose.msra.mxu0 0.0
        %461 = vmatpush.xpose.msra.mxu0 0.0
        %462 = vmatpush.xpose.msra.mxu0 0.0
        %463 = vmatpush.xpose.msra.mxu0 0.0
        %464 = vmatpush.xpose.msra.mxu0 0.0
        %v465 = vand.u32 %v179, 4294901760
        %466 = vmatpush.xpose.msra.mxu0 %v465
        %v467 = vand.u32 %v179, 4294901760
        %468 = vmatmul.f32.gmra.mxu0 %v467
        %v469 = vpop.f32.mrf.mxu0
        %v470 = vadd.f32 %v448, %v469
        %471 = vdwg.mxu0
        %v472 = vsub.f32 0.0, %v470
        %vm473 = vcmask 64512
        %v474 = vsel %vm473, %v472, -inf
        %475 = vmax.xlane.f32.xlu0 %v474
        %v476 = vpop.xlane.xlu0 %475
        %v477 = vsub.f32 %v472, %v476
        %v478 = vmul.f32 %v477, 1.442695
        %v479 = vpow.pop %v478
        %v480 = vsel %vm473, %v479, 0.0
        %481 = vadd.xlane.f32.xlu0 %v480
        %v482 = vpop.xlane.xlu0 %481
        %s483 = sld [smem:[#allocation2]]
        %v484 = vstv %s483
        %v485 = vrcp.pop %v482
        %v486 = vmul.f32 %v482, %v485
        %v487 = vsub.f32 1.0, %v486
        %v488 = vmul.f32 %v485, %v487
        %v489 = vadd.f32 %v485, %v488
        %vm490 = vweird.f32 %v482
        %vm491 = vweird.f32 %v485
        %vm492 = vmor %vm490, %vm491
        %v493 = vsel %vm492, %v485, %v489
        %v494 = vand.u32 2147483647, %v482
        %vm495 = vcmp.eq.f32.partialorder %v494, 8.507059e+37
        %v496 = vand.u32 %v482, 2147483648
        %v497 = vor.u32 1.1754944e-38, %v496
        %v498 = vsel %vm495, %v497, %v493
        %v499 = vmul.f32 %v484, %v498
        %v500 = vmul.f32 %v479, %v499
        %v502 = vsel %vm473, %v500, 0
        %504 = vmatpush.msra.mxu0 0.0
        %505 = vmatpush.msra.mxu0 0.0
        %506 = vmatpush.msra.mxu0 0.0
        %507 = vmatpush.msra.mxu0 0.0
        %508 = vmatpush.msra.mxu0 0.0
        %509 = vmatpush.msra.mxu0 0.0
        %510 = vmatpush.msra.mxu0 0.0
        %511 = vmatpush.msra.mxu0 0.0
        %512 = vmatpush.msra.mxu0 0.0
        %513 = vmatpush.msra.mxu0 0.0
        %514 = vmatpush.msra.mxu0 0.0
        %515 = vmatpush.msra.mxu0 0.0
        %516 = vmatpush.msra.mxu0 0.0
        %517 = vmatpush.msra.mxu0 0.0
        %518 = vmatpush.msra.mxu0 0.0
        %v519 = vand.u32 %v178, 4294901760
        %520 = vmatpush.msra.mxu0 %v519
        %v521 = vand.u32 %v502, 4294901760
        %v522 = vsub.f32 %v502, %v521
        %v523 = vand.u32 %v522, 4294901760
        %v524 = vsub.f32 %v522, %v523
        %v525 = vand.u32 %v524, 4294901760
        %526 = vmatmul.f32.gmra.mxu0 %v525
        %v527 = vpop.f32.mrf.mxu0
        %v528 = vadd.f32 %v178, %v527
        %529 = vdwg.mxu0
        %530 = vmatpush.msra.mxu0 0.0
        %531 = vmatpush.msra.mxu0 0.0
        %532 = vmatpush.msra.mxu0 0.0
        %533 = vmatpush.msra.mxu0 0.0
        %534 = vmatpush.msra.mxu0 0.0
        %535 = vmatpush.msra.mxu0 0.0
        %536 = vmatpush.msra.mxu0 0.0
        %537 = vmatpush.msra.mxu0 0.0
        %538 = vmatpush.msra.mxu0 0.0
        %539 = vmatpush.msra.mxu0 0.0
        %540 = vmatpush.msra.mxu0 0.0
        %541 = vmatpush.msra.mxu0 0.0
        %542 = vmatpush.msra.mxu0 0.0
        %543 = vmatpush.msra.mxu0 0.0
        %544 = vmatpush.msra.mxu0 0.0
        %v545 = vand.u32 %v178, 4294901760
        %v546 = vsub.f32 %v178, %v545
        %v547 = vand.u32 %v546, 4294901760
        %v548 = vsub.f32 %v546, %v547
        %v549 = vand.u32 %v548, 4294901760
        %550 = vmatpush.msra.mxu0 %v549
        %v551 = vand.u32 %v502, 4294901760
        %552 = vmatmul.f32.gmra.mxu0 %v551
        %v553 = vpop.f32.mrf.mxu0
        %v554 = vadd.f32 %v528, %v553
        %555 = vdwg.mxu0
        %556 = vmatpush.msra.mxu0 0.0
        %557 = vmatpush.msra.mxu0 0.0
        %558 = vmatpush.msra.mxu0 0.0
        %559 = vmatpush.msra.mxu0 0.0
        %560 = vmatpush.msra.mxu0 0.0
        %561 = vmatpush.msra.mxu0 0.0
        %562 = vmatpush.msra.mxu0 0.0
        %563 = vmatpush.msra.mxu0 0.0
        %564 = vmatpush.msra.mxu0 0.0
        %565 = vmatpush.msra.mxu0 0.0
        %566 = vmatpush.msra.mxu0 0.0
        %567 = vmatpush.msra.mxu0 0.0
        %568 = vmatpush.msra.mxu0 0.0
        %569 = vmatpush.msra.mxu0 0.0
        %570 = vmatpush.msra.mxu0 0.0
        %v571 = vand.u32 %v178, 4294901760
        %v572 = vsub.f32 %v178, %v571
        %573 = vmatpush.msra.mxu0 %v572
        %v574 = vand.u32 %v502, 4294901760
        %v575 = vsub.f32 %v502, %v574
        %576 = vmatmul.f32.gmra.mxu0 %v575
        %v577 = vpop.f32.mrf.mxu0
        %v578 = vadd.f32 %v554, %v577
        %579 = vdwg.mxu0
        %580 = vmatpush.msra.mxu0 0.0
        %581 = vmatpush.msra.mxu0 0.0
        %582 = vmatpush.msra.mxu0 0.0
        %583 = vmatpush.msra.mxu0 0.0
        %584 = vmatpush.msra.mxu0 0.0
        %585 = vmatpush.msra.mxu0 0.0
        %586 = vmatpush.msra.mxu0 0.0
        %587 = vmatpush.msra.mxu0 0.0
        %588 = vmatpush.msra.mxu0 0.0
        %589 = vmatpush.msra.mxu0 0.0
        %590 = vmatpush.msra.mxu0 0.0
        %591 = vmatpush.msra.mxu0 0.0
        %592 = vmatpush.msra.mxu0 0.0
        %593 = vmatpush.msra.mxu0 0.0
        %594 = vmatpush.msra.mxu0 0.0
        %v595 = vand.u32 %v178, 4294901760
        %596 = vmatpush.msra.mxu0 %v595
        %v597 = vand.u32 %v502, 4294901760
        %v598 = vsub.f32 %v502, %v597
        %v599 = vand.u32 %v598, 4294901760
        %600 = vmatmul.f32.gmra.mxu0 %v599
        %v601 = vpop.f32.mrf.mxu0
        %v602 = vadd.f32 %v578, %v601
        %603 = vdwg.mxu0
        %604 = vmatpush.msra.mxu0 0.0
        %605 = vmatpush.msra.mxu0 0.0
        %606 = vmatpush.msra.mxu0 0.0
        %607 = vmatpush.msra.mxu0 0.0
        %608 = vmatpush.msra.mxu0 0.0
        %609 = vmatpush.msra.mxu0 0.0
        %610 = vmatpush.msra.mxu0 0.0
        %611 = vmatpush.msra.mxu0 0.0
        %612 = vmatpush.msra.mxu0 0.0
        %613 = vmatpush.msra.mxu0 0.0
        %614 = vmatpush.msra.mxu0 0.0
        %615 = vmatpush.msra.mxu0 0.0
        %616 = vmatpush.msra.mxu0 0.0
        %617 = vmatpush.msra.mxu0 0.0
        %618 = vmatpush.msra.mxu0 0.0
        %v619 = vand.u32 %v178, 4294901760
        %v620 = vsub.f32 %v178, %v619
        %v621 = vand.u32 %v620, 4294901760
        %622 = vmatpush.msra.mxu0 %v621
        %v623 = vand.u32 %v502, 4294901760
        %624 = vmatmul.f32.gmra.mxu0 %v623
        %v625 = vpop.f32.mrf.mxu0
        %v626 = vadd.f32 %v602, %v625
        %627 = vdwg.mxu0
        %628 = vmatpush.msra.mxu0 0.0
        %629 = vmatpush.msra.mxu0 0.0
        %630 = vmatpush.msra.mxu0 0.0
        %631 = vmatpush.msra.mxu0 0.0
        %632 = vmatpush.msra.mxu0 0.0
        %633 = vmatpush.msra.mxu0 0.0
        %634 = vmatpush.msra.mxu0 0.0
        %635 = vmatpush.msra.mxu0 0.0
        %636 = vmatpush.msra.mxu0 0.0
        %637 = vmatpush.msra.mxu0 0.0
        %638 = vmatpush.msra.mxu0 0.0
        %639 = vmatpush.msra.mxu0 0.0
        %640 = vmatpush.msra.mxu0 0.0
        %641 = vmatpush.msra.mxu0 0.0
        %642 = vmatpush.msra.mxu0 0.0
        %v643 = vand.u32 %v178, 4294901760
        %644 = vmatpush.msra.mxu0 %v643
        %v645 = vand.u32 %v502, 4294901760
        %646 = vmatmul.f32.gmra.mxu0 %v645
        %v647 = vpop.f32.mrf.mxu0
        %v648 = vadd.f32 %v626, %v647
        %649 = vdwg.mxu0
        %650 = vmatpush.msra.mxu0 0.0
        %651 = vmatpush.msra.mxu0 0.0
        %652 = vmatpush.msra.mxu0 0.0
        %653 = vmatpush.msra.mxu0 0.0
        %654 = vmatpush.msra.mxu0 0.0
        %655 = vmatpush.msra.mxu0 0.0
        %656 = vmatpush.msra.mxu0 0.0
        %657 = vmatpush.msra.mxu0 0.0
        %658 = vmatpush.msra.mxu0 0.0
        %659 = vmatpush.msra.mxu0 0.0
        %660 = vmatpush.msra.mxu0 0.0
        %661 = vmatpush.msra.mxu0 0.0
        %662 = vmatpush.msra.mxu0 0.0
        %663 = vmatpush.msra.mxu0 0.0
        %664 = vmatpush.msra.mxu0 0.0
        %v665 = vand.u32 %v179, 4294901760
        %666 = vmatpush.msra.mxu0 %v665
        %v667 = vand.u32 %v502, 4294901760
        %v668 = vsub.f32 %v502, %v667
        %v669 = vand.u32 %v668, 4294901760
        %v670 = vsub.f32 %v668, %v669
        %v671 = vand.u32 %v670, 4294901760
        %672 = vmatmul.f32.gmra.mxu0 %v671
        %v673 = vpop.f32.mrf.mxu0
        %v674 = vadd.f32 %v179, %v673
        %675 = vdwg.mxu0
        %676 = vmatpush.msra.mxu0 0.0
        %677 = vmatpush.msra.mxu0 0.0
        %678 = vmatpush.msra.mxu0 0.0
        %679 = vmatpush.msra.mxu0 0.0
        %680 = vmatpush.msra.mxu0 0.0
        %681 = vmatpush.msra.mxu0 0.0
        %682 = vmatpush.msra.mxu0 0.0
        %683 = vmatpush.msra.mxu0 0.0
        %684 = vmatpush.msra.mxu0 0.0
        %685 = vmatpush.msra.mxu0 0.0
        %686 = vmatpush.msra.mxu0 0.0
        %687 = vmatpush.msra.mxu0 0.0
        %688 = vmatpush.msra.mxu0 0.0
        %689 = vmatpush.msra.mxu0 0.0
        %690 = vmatpush.msra.mxu0 0.0
        %v691 = vand.u32 %v179, 4294901760
        %v692 = vsub.f32 %v179, %v691
        %v693 = vand.u32 %v692, 4294901760
        %v694 = vsub.f32 %v692, %v693
        %v695 = vand.u32 %v694, 4294901760
        %696 = vmatpush.msra.mxu0 %v695
        %v697 = vand.u32 %v502, 4294901760
        %698 = vmatmul.f32.gmra.mxu0 %v697
        %v699 = vpop.f32.mrf.mxu0
        %v700 = vadd.f32 %v674, %v699
        %701 = vdwg.mxu0
        %702 = vmatpush.msra.mxu0 0.0
        %703 = vmatpush.msra.mxu0 0.0
        %704 = vmatpush.msra.mxu0 0.0
        %705 = vmatpush.msra.mxu0 0.0
        %706 = vmatpush.msra.mxu0 0.0
        %707 = vmatpush.msra.mxu0 0.0
        %708 = vmatpush.msra.mxu0 0.0
        %709 = vmatpush.msra.mxu0 0.0
        %710 = vmatpush.msra.mxu0 0.0
        %711 = vmatpush.msra.mxu0 0.0
        %712 = vmatpush.msra.mxu0 0.0
        %713 = vmatpush.msra.mxu0 0.0
        %714 = vmatpush.msra.mxu0 0.0
        %715 = vmatpush.msra.mxu0 0.0
        %716 = vmatpush.msra.mxu0 0.0
        %v717 = vand.u32 %v179, 4294901760
        %v718 = vsub.f32 %v179, %v717
        %719 = vmatpush.msra.mxu0 %v718
        %v720 = vand.u32 %v502, 4294901760
        %v721 = vsub.f32 %v502, %v720
        %722 = vmatmul.f32.gmra.mxu0 %v721
        %v723 = vpop.f32.mrf.mxu0
        %v724 = vadd.f32 %v700, %v723
        %725 = vdwg.mxu0
        %726 = vmatpush.msra.mxu0 0.0
        %727 = vmatpush.msra.mxu0 0.0
        %728 = vmatpush.msra.mxu0 0.0
        %729 = vmatpush.msra.mxu0 0.0
        %730 = vmatpush.msra.mxu0 0.0
        %731 = vmatpush.msra.mxu0 0.0
        %732 = vmatpush.msra.mxu0 0.0
        %733 = vmatpush.msra.mxu0 0.0
        %734 = vmatpush.msra.mxu0 0.0
        %735 = vmatpush.msra.mxu0 0.0
        %736 = vmatpush.msra.mxu0 0.0
        %737 = vmatpush.msra.mxu0 0.0
        %738 = vmatpush.msra.mxu0 0.0
        %739 = vmatpush.msra.mxu0 0.0
        %740 = vmatpush.msra.mxu0 0.0
        %v741 = vand.u32 %v179, 4294901760
        %742 = vmatpush.msra.mxu0 %v741
        %v743 = vand.u32 %v502, 4294901760
        %v744 = vsub.f32 %v502, %v743
        %v745 = vand.u32 %v744, 4294901760
        %746 = vmatmul.f32.gmra.mxu0 %v745
        %v747 = vpop.f32.mrf.mxu0
        %v748 = vadd.f32 %v724, %v747
        %749 = vdwg.mxu0
        %750 = vmatpush.msra.mxu0 0.0
        %751 = vmatpush.msra.mxu0 0.0
        %752 = vmatpush.msra.mxu0 0.0
        %753 = vmatpush.msra.mxu0 0.0
        %754 = vmatpush.msra.mxu0 0.0
        %755 = vmatpush.msra.mxu0 0.0
        %756 = vmatpush.msra.mxu0 0.0
        %757 = vmatpush.msra.mxu0 0.0
        %758 = vmatpush.msra.mxu0 0.0
        %759 = vmatpush.msra.mxu0 0.0
        %760 = vmatpush.msra.mxu0 0.0
        %761 = vmatpush.msra.mxu0 0.0
        %762 = vmatpush.msra.mxu0 0.0
        %763 = vmatpush.msra.mxu0 0.0
        %764 = vmatpush.msra.mxu0 0.0
        %v765 = vand.u32 %v179, 4294901760
        %v766 = vsub.f32 %v179, %v765
        %v767 = vand.u32 %v766, 4294901760
        %768 = vmatpush.msra.mxu0 %v767
        %v769 = vand.u32 %v502, 4294901760
        %770 = vmatmul.f32.gmra.mxu0 %v769
        %v771 = vpop.f32.mrf.mxu0
        %v772 = vadd.f32 %v748, %v771
        %773 = vdwg.mxu0
        %774 = vmatpush.msra.mxu0 0.0
        %775 = vmatpush.msra.mxu0 0.0
        %776 = vmatpush.msra.mxu0 0.0
        %777 = vmatpush.msra.mxu0 0.0
        %778 = vmatpush.msra.mxu0 0.0
        %779 = vmatpush.msra.mxu0 0.0
        %780 = vmatpush.msra.mxu0 0.0
        %781 = vmatpush.msra.mxu0 0.0
        %782 = vmatpush.msra.mxu0 0.0
        %783 = vmatpush.msra.mxu0 0.0
        %784 = vmatpush.msra.mxu0 0.0
        %785 = vmatpush.msra.mxu0 0.0
        %786 = vmatpush.msra.mxu0 0.0
        %787 = vmatpush.msra.mxu0 0.0
        %788 = vmatpush.msra.mxu0 0.0
        %v789 = vand.u32 %v179, 4294901760
        %790 = vmatpush.msra.mxu0 %v789
        %v791 = vand.u32 %v502, 4294901760
        %792 = vmatmul.f32.gmra.mxu0 %v791
        %v793 = vpop.f32.mrf.mxu0
        %v794 = vadd.f32 %v772, %v793
        %795 = vdwg.mxu0
        %796 = vst [vmem:[%s173] sm:$0xff] %v648
        %797 = vst [vmem:[%s173 + $0x8] sm:$0xff] %v794
        %s798 = sand.u32 %s83, 1
        %s799 = scalar_lea.sflag [#allocation5], %s798
        %s800 = sand.u32 %s83, 1
        %s801 = smul.addr %s800, 16
        %s802 = scalar_lea.vmem [#allocation6], %s801
        // Predicated region
        $region33: #{tpu_custom_call.1} parent=27 // pred_check
          %p803 = pneg %p93
        $region34: #{tpu_custom_call.1} parent=27 // pred_check_branch
          %805 = sbr.rel (%p803) target = $region36
        $region35: #{tpu_custom_call.1} parent=27 // pred_region
          %s806 = sadd.s32 %s20, 1
          %s807 = smul.u32 2, %s806
          %809 = vsyncadd %s799, 0
          %s810 = smul.addr %s20, 8
          %s811 = sadd.s32 %s807, %s810
          %s812 = smul.addr %s811, 8
          %s813 = scalar_lea.hbm %s2, %s812
          %s815 = sshll.u32 %s802, 4
          %s816 = int_to_ptr.vmem [resolvable:$true] %s815
          %s817 = sshll.u32 %s813, 4
          %s818 = int_to_ptr.hbm [resolvable:$true] %s817
          %820 = dma.vmem_to_hbm [thread:$0]  %s816, 256, %s818, %s799
        $region36: #{tpu_custom_call.1} parent=27 // pred_fallthru
          _
      $region28: #{tpu_custom_call.1} parent=5 // pred_fallthru
        _
      %p821 = scmp.le.s32.totalorder 2, %s15
      // Predicated region
      $region37: #{tpu_custom_call.1} parent=5 // pred_check
        %p822 = pneg %p821
      $region38: #{tpu_custom_call.1} parent=5 // pred_check_branch
        %824 = sbr.rel (%p822) target = $region40
      $region39: #{tpu_custom_call.1} parent=5 // pred_region
        %s825 = ssub.s32 %s15, 2
        // Predicated region
        $region41: #{tpu_custom_call.1} parent=39 // pred_check
          %p826 = pneg %p99
        $region42: #{tpu_custom_call.1} parent=39 // pred_check_branch
          %828 = sbr.rel (%p826) target = $region44
        $region43: #{tpu_custom_call.1} parent=39 // pred_region
          %s829 = sand.u32 %s84, 1
          %s830 = scalar_lea.sflag [#allocation5], %s829
          %s831 = sand.u32 %s84, 1
          %s832 = smul.addr %s831, 16
          %s833 = scalar_lea.vmem [#allocation6], %s832
          %835 = dma.done %s830, 256
        $region44: #{tpu_custom_call.1} parent=39 // pred_fallthru
          _
      $region40: #{tpu_custom_call.1} parent=5 // pred_fallthru
        _
    $region6: #{tpu_custom_call.1} parent=1 // loop_footer
      %s19 = sadd.s32 1, %s15
    $region7: #{tpu_custom_call.1} parent=1 // loop_footer_branch
      %14 = sbr.rel target = $region3
    $region8: #{tpu_custom_call.1} parent=1 // loop_exit
      _
    %836 = vsyncpa [#allocation4], 1
    %s837 = scalar_lea.sflag [#allocation4], 1
    %838 = vsyncpa %s837, 1
    %839 = vsyncpa [#allocation5], 1
    %s840 = scalar_lea.sflag [#allocation5], 1
    %841 = vsyncpa %s840, 1

</llo_original>
